<compile_context>
chip_gen: v7x
topology: tpu7x:2x2x1
jax: 0.10.0
libtpu: 0.0.40
codegen_flags: <defaults>
</compile_context>

<pallas_src>
import functools

import jax
import jax.numpy as jnp
from jax.experimental import pallas as pl
from jax.experimental.pallas import tpu as pltpu


_NBUF = 4                              # max outstanding HBM->HBM DMAs
_CHUNK_TARGET_BYTES = 8 * 1024 * 1024  # ~8 MiB per chunk in the chunked path


def _single_copy_kernel(x_hbm, o_hbm, sem):
    # One whole-buffer HBM -> HBM DMA.  No VMEM staging.
    cp = pltpu.make_async_copy(x_hbm, o_hbm, sem)
    cp.start()
    cp.wait()


def _make_chunked_copy_kernel(n_chunks: int, chunk_lead: int, nbuf: int):
    """HBM->HBM copy split along the leading dim, `nbuf` DMAs in flight."""

    def kernel(x_hbm, o_hbm, sems):
        def dma(i, slot):
            return pltpu.make_async_copy(
                x_hbm.at[pl.ds(i * chunk_lead, chunk_lead)],
                o_hbm.at[pl.ds(i * chunk_lead, chunk_lead)],
                sems.at[slot],
            )

        n_prime = min(nbuf, n_chunks)

        # Prime up to `nbuf` outstanding DMAs.
        @pl.loop(0, n_prime)
        def _(i):
            dma(i, i).start()

        # Steady state: wait chunk i, immediately reuse its slot for i+nbuf.
        @pl.loop(0, n_chunks)
        def _(i):
            slot = i % nbuf
            dma(i, slot).wait()
            nxt = i + nbuf

            @pl.when(nxt < n_chunks)
            def _():
                dma(nxt, slot).start()

    return kernel


@functools.lru_cache(maxsize=None)
def _build_copy(shape, dtype_str, n_chunks, chunk_lead):
    dtype = jnp.dtype(dtype_str)
    total_bytes = int(dtype.itemsize)
    for d in shape:
        total_bytes *= int(d)

    if n_chunks <= 1:
        kernel = _single_copy_kernel
        scratch = [pltpu.SemaphoreType.DMA]
    else:
        kernel = _make_chunked_copy_kernel(n_chunks, chunk_lead, _NBUF)
        scratch = [pltpu.SemaphoreType.DMA((_NBUF,))]

    copy = pl.pallas_call(
        kernel,
        out_shape=jax.ShapeDtypeStruct(shape, dtype),
        in_specs=[pl.BlockSpec(memory_space=pl.ANY)],   # raw HBM ref
        out_specs=pl.BlockSpec(memory_space=pl.ANY),    # raw HBM ref
        scratch_shapes=scratch,
        cost_estimate=pl.CostEstimate(
            flops=0, transcendentals=0, bytes_accessed=2 * total_bytes),
    )
    return jax.jit(copy)


def _smallest_divisor_at_least(n: int, m: int) -> int:
    """Smallest divisor of n that is >= m (so chunks tile the leading dim exactly)."""
    m = max(1, min(m, n))
    best = n
    d = 1
    while d * d <= n:
        if n % d == 0:
            for c in (d, n // d):
                if c >= m:
                    best = min(best, c)
        d += 1
    return best


def device_to(x: jax.Array, materialize: bool = False,
              chunk_bytes: int = _CHUNK_TARGET_BYTES) -> jax.Array:
    """Pallas equivalent of `Device.forward` (`x.to(device)`).

    Default: identity (already on device) — return x, no kernel.
    materialize=True: produce a fresh on-device buffer via direct HBM->HBM DMA.
    """
    if not materialize:
        # `.to(device)` with no device change is the identity.
        return x

    if x.size == 0:
        return x
    if x.ndim == 0:
        # 0-d: DMA a (1,)-view and restore the scalar shape (cheap, 4-8 bytes).
        return device_to(x.reshape(1), materialize=True,
                         chunk_bytes=chunk_bytes).reshape(())

    itemsize = int(jnp.dtype(x.dtype).itemsize)
    total_bytes = int(x.size) * itemsize
    lead = int(x.shape[0])

    # Decide chunking along the leading dim (only if it tiles evenly and the
    # array is big enough that overlapping DMA issue latency matters).
    n_chunks, chunk_lead = 1, lead
    if lead > 1 and total_bytes >= 2 * chunk_bytes:
        bytes_per_lead = total_bytes // lead
        target_lead = max(1, chunk_bytes // max(1, bytes_per_lead))
        chunk_lead = _smallest_divisor_at_least(lead, target_lead)
        n_chunks = lead // chunk_lead
        if n_chunks <= 1:
            n_chunks, chunk_lead = 1, lead

    copy = _build_copy(tuple(int(d) for d in x.shape),
                       str(jnp.dtype(x.dtype)),
                       int(n_chunks), int(chunk_lead))
    return copy(x)


if __name__ == "__main__":
    key = jax.random.PRNGKey(0)
    # Small NCHW input consistent with a typical module input.
    x = jax.random.normal(key, (2, 4, 16, 16), dtype=jnp.float32)

    # Fast path: `.to(device)` with no device change — identity, no kernel.
    y_fast = device_to(x)
    jax.block_until_ready(y_fast)
    assert y_fast.shape == x.shape and y_fast.dtype == x.dtype
    assert bool(jnp.array_equal(y_fast, x)), "fast-path identity mismatch"

    # Materialized copy: single whole-buffer HBM->HBM DMA (no VMEM staging,
    # no padding, no alias).
    y_copy = device_to(x, materialize=True)
    jax.block_until_ready(y_copy)
    assert y_copy.shape == x.shape and y_copy.dtype == x.dtype
    assert bool(jnp.array_equal(y_copy, x)), "pallas DMA copy mismatch"

    # dtype-agnostic: bf16 goes through the same DMA path (no sublane-tiling
    # constraints apply because nothing is staged through VMEM vregs).
    xb = x.astype(jnp.bfloat16)
    yb = device_to(xb, materialize=True)
    jax.block_until_ready(yb)
    assert yb.dtype == jnp.bfloat16 and bool(jnp.array_equal(yb, xb))

    # Chunked path, forced at test size with a small chunk target:
    # 8 chunks of 1 leading row each, up to 4 DMAs in flight.
    xl = jax.random.normal(jax.random.PRNGKey(1), (8, 128, 128),
                           dtype=jnp.float32)
    yl = device_to(xl, materialize=True, chunk_bytes=64 * 1024)
    jax.block_until_ready(yl)
    assert yl.shape == xl.shape and yl.dtype == xl.dtype
    assert bool(jnp.array_equal(yl, xl)), "chunked DMA copy mismatch"

    print("KERNEL_OK")
</pallas_src>

<mosaic_0001>
module attributes {stable_mosaic.version = 11 : i64} {
  func.func @_single_copy_kernel(%arg0: memref<2x4x16x16xf32, #tpu.memory_space<any>>, %arg1: memref<2x4x16x16xf32, #tpu.memory_space<any>>, %arg2: memref<!tpu.dma_semaphore, #tpu.memory_space<semaphore_mem>>) attributes {dimension_semantics = [], scalar_prefetch = 0 : i64, scratch_operands = 1 : i64, tpu.core_type = #tpu.core_type<tc>} {
    tpu.enqueue_dma source(%arg0 : memref<2x4x16x16xf32, #tpu.memory_space<any>>) target(%arg1 : memref<2x4x16x16xf32, #tpu.memory_space<any>>) target_semaphore(%arg2 : memref<!tpu.dma_semaphore, #tpu.memory_space<semaphore_mem>>)
    tpu.wait_dma2 semaphore(%arg2 : memref<!tpu.dma_semaphore, #tpu.memory_space<semaphore_mem>>) src(%arg0 : memref<2x4x16x16xf32, #tpu.memory_space<any>>) dst(%arg1 : memref<2x4x16x16xf32, #tpu.memory_space<any>>)
    return
  }
}

</mosaic_0001>

<llo_original>
// kernel: tpu_custom_call.1
$region0: #{tpu_custom_call.1}
  #allocation0 [shape = 'u32[]', space=smem, size = 0x4, offset = 0x4, fixed_abs, tag = 'smem constant byte address 0x4 - core index']
  #allocation1 [shape = 'u32[144,128]{1,0:T(1,128)}', space=vmem, size = 0x12000, scoped, tag = 'internal scratch']
  #allocation2 [shape = 's32[1]{0}', space=sflag, size = 0x4, scoped, tag = 'scratch operand']
  #allocation3 [shape = 's32[]', space=sflag, size = 0x4, offset = 0, fixed_abs, tag = 'sflag constant byte address 0x0 - dummy sync flag']
  #allocation4 [shape = 'u32[0]{0}', space=smem, size = 0, offset = 0, fixed_abs, tag = 'smem constant byte address 0x0 - null']
  %s0 = inlined_call_operand.hbm [shape: f32[2,4,16,16], index: 0, kind: input, shape index: {}]
  %s1 = inlined_call_operand.hbm [shape: f32[2,4,16,16], index: 1, kind: output, shape index: {}]
  %s2 = sld [smem:[#allocation0]]
  $region2: #{tpu_custom_call.1} parent=0
    _
  %s4 = ssub.s32 1, %s2
  %s5 = scalar_select 0, %s4, %s2
  %s7 = sshll.u32 1, 14
  %s8 = sxor.u32 4294967295, %s7
  %s11 = sshll.u32 3, 24
  %s12 = sxor.u32 4294967295, %s11
  %s13 = sand.u32 0, %s12
  %s15 = sor.u32 %s13, 0
  %18 = dma.general %s0, 2048, %s1, [#allocation2], [#allocation3], [#allocation4], %s15, 0
  %s19 = smul.u32 2, 4
  %s20 = smul.u32 %s19, 16
  %s21 = smul.u32 %s20, 1
  %s22 = sshll.u32 %s21, 4
  %23 = dma.done [#allocation2], %s22
  %24 = vsyncmov [#allocation2]
  %s25 = vpop.sfrf %24
  %p26 = scmp.eq.s32.totalorder %s25, 0
  %p27 = pneg %p26
  %29 = shalt.err (%p27)

</llo_original>
